<compile_context>
chip_gen: v6e
topology: v6e:2x2x1
jax: 0.10.0
libtpu: 0.0.40
codegen_flags: <defaults>
</compile_context>

<pallas_src>
import functools

import jax
import jax.numpy as jnp
import numpy as np
from jax.experimental import pallas as pl
from jax.experimental.pallas import tpu as pltpu


def _lstm_cls_kernel(x2d_ref, wih_ref, whh_ref, b_ref, wfc_ref, bfc_ref, out_ref):
    TB, F = x2d_ref.shape            # x2d rows are t-major: step t -> rows t*B:(t+1)*B
    H = whh_ref.shape[0]
    B = out_ref.shape[0]
    T = TB // B

    wih = wih_ref[...]               # (F, 4H), columns ordered (i, f, o, g)
    whh = whh_ref[...]               # (H, 4H), columns ordered (i, f, o, g)
    b = b_ref[...]                   # (1, 4H)

    # One fused matmul + one broadcast bias add for ALL timesteps' x-side gate
    # pre-activations.  Independent of h, so it overlaps with / precedes the
    # serial recurrence instead of sitting on it.
    xg_all = jnp.dot(x2d_ref[...], wih,
                     preferred_element_type=jnp.float32) + b   # (T*B, 4H)

    h = jnp.zeros((B, H), jnp.float32)
    c = jnp.zeros((B, H), jnp.float32)

    # Static loop: T is a compile-time constant derived from the block shape.
    # Only the h @ W_hh matmul (loop-invariant RHS) is on the per-step chain.
    for t in range(T):
        xg_t = xg_all[t * B:(t + 1) * B, :]                    # static 2-row slice
        gates = xg_t + jnp.dot(h, whh, preferred_element_type=jnp.float32)
        # Columns are (i, f, o, g): one contiguous sigmoid over 0:3H, tanh on 3H:4H.
        sig = jax.nn.sigmoid(gates[:, 0:3 * H])
        i = sig[:, 0 * H:1 * H]
        f = sig[:, 1 * H:2 * H]
        o = sig[:, 2 * H:3 * H]
        g = jnp.tanh(gates[:, 3 * H:4 * H])
        c = f * c + i * g
        h = o * jnp.tanh(c)

    logits = (jnp.dot(h, wfc_ref[...], preferred_element_type=jnp.float32)
              + bfc_ref[...])
    out_ref[...] = jax.nn.sigmoid(logits).astype(out_ref.dtype)


def _reorder_ifgo_to_ifog(w):
    """Reorder the 4H leading axis from torch (i,f,g,o) to (i,f,o,g)."""
    i, f, g, o = jnp.split(w, 4, axis=0)
    return jnp.concatenate([i, f, o, g], axis=0)


@functools.partial(jax.jit, static_argnames=())
def simple_rnn_classification(x_btf, w_ih, w_hh, b_ih, b_hh, w_fc, b_fc):
    """x_btf: (B, T, F) batch_first, like torch.nn.LSTM(batch_first=True)."""
    B, T, F = x_btf.shape
    H = w_hh.shape[1]            # w_hh: (4H, H)
    C = w_fc.shape[0]            # w_fc: (C, H)

    # Layout plumbing only (no compute hoisted into the wrapper):
    # t-major 2-D view of x so the kernel does ONE (T*B,F)@(F,4H) matmul and
    # step t's rows are the contiguous block t*B:(t+1)*B.
    x2d = jnp.transpose(x_btf.astype(jnp.float32), (1, 0, 2)).reshape(T * B, F)
    wih_t = jnp.transpose(_reorder_ifgo_to_ifog(w_ih)).astype(jnp.float32)  # (F, 4H)
    whh_t = jnp.transpose(_reorder_ifgo_to_ifog(w_hh)).astype(jnp.float32)  # (H, 4H)
    b = _reorder_ifgo_to_ifog(
        (b_ih + b_hh).reshape(4 * H, 1)).reshape(1, 4 * H).astype(jnp.float32)
    wfc_t = jnp.transpose(w_fc).astype(jnp.float32)                         # (H, C)
    bfc = b_fc.reshape(1, C).astype(jnp.float32)                            # (1, C)

    return pl.pallas_call(
        _lstm_cls_kernel,
        out_shape=jax.ShapeDtypeStruct((B, C), jnp.float32),
        grid=(1,),
        in_specs=[
            pl.BlockSpec((T * B, F), lambda i: (0, 0)),       # x, t-major rows
            pl.BlockSpec((F, 4 * H), lambda i: (0, 0)),       # W_ih^T (i,f,o,g)
            pl.BlockSpec((H, 4 * H), lambda i: (0, 0)),       # W_hh^T (i,f,o,g)
            pl.BlockSpec((1, 4 * H), lambda i: (0, 0)),       # combined bias
            pl.BlockSpec((H, C), lambda i: (0, 0)),           # W_fc^T
            pl.BlockSpec((1, C), lambda i: (0, 0)),           # b_fc
        ],
        out_specs=pl.BlockSpec((B, C), lambda i: (0, 0)),
        compiler_params=pltpu.CompilerParams(
            dimension_semantics=("arbitrary",)),
    )(x2d, wih_t, whh_t, b, wfc_t, bfc)


def _reference(x_btf, w_ih, w_hh, b_ih, b_hh, w_fc, b_fc):
    """Pure-JAX reference implementing torch.nn.LSTM + Linear + sigmoid."""
    B, T, F = x_btf.shape
    H = w_hh.shape[1]

    def step(carry, x_t):
        h, c = carry
        gates = x_t @ w_ih.T + b_ih + h @ w_hh.T + b_hh
        i = jax.nn.sigmoid(gates[:, 0 * H:1 * H])
        f = jax.nn.sigmoid(gates[:, 1 * H:2 * H])
        g = jnp.tanh(gates[:, 2 * H:3 * H])
        o = jax.nn.sigmoid(gates[:, 3 * H:4 * H])
        c = f * c + i * g
        h = o * jnp.tanh(c)
        return (h, c), None

    h0 = jnp.zeros((B, H), jnp.float32)
    c0 = jnp.zeros((B, H), jnp.float32)
    (h_last, _), _ = jax.lax.scan(step, (h0, c0), jnp.transpose(x_btf, (1, 0, 2)))
    return jax.nn.sigmoid(h_last @ w_fc.T + b_fc)


if __name__ == "__main__":
    # Small shapes implied by the module's forward:
    B, T, F = 2, 8, 4          # batch, seq_len, n_features
    H, C = 32, 3               # rnn_hidden_size, n_classes

    key = jax.random.PRNGKey(0)
    ks = jax.random.split(key, 8)
    bound = 1.0 / np.sqrt(H)   # torch default uniform init range

    x = jax.random.normal(ks[0], (B, T, F), jnp.float32)
    w_ih = jax.random.uniform(ks[1], (4 * H, F), jnp.float32, -bound, bound)
    w_hh = jax.random.uniform(ks[2], (4 * H, H), jnp.float32, -bound, bound)
    b_ih = jax.random.uniform(ks[3], (4 * H,), jnp.float32, -bound, bound)
    b_hh = jax.random.uniform(ks[4], (4 * H,), jnp.float32, -bound, bound)
    w_fc = jax.random.uniform(ks[5], (C, H), jnp.float32, -bound, bound)
    b_fc = jax.random.uniform(ks[6], (C,), jnp.float32, -bound, bound)

    out = simple_rnn_classification(x, w_ih, w_hh, b_ih, b_hh, w_fc, b_fc)
    out = jax.block_until_ready(out)

    ref = _reference(x, w_ih, w_hh, b_ih, b_hh, w_fc, b_fc)
    np.testing.assert_allclose(np.asarray(out), np.asarray(ref), atol=1e-5, rtol=1e-5)

    print("KERNEL_OK")
</pallas_src>

<mosaic_0001>
module attributes {stable_mosaic.version = 11 : i64} {
  func.func @_lstm_cls_kernel(%arg0: i32, %arg1: memref<16x4xf32, #tpu.memory_space<vmem>>, %arg2: memref<4x128xf32, #tpu.memory_space<vmem>>, %arg3: memref<32x128xf32, #tpu.memory_space<vmem>>, %arg4: memref<1x128xf32, #tpu.memory_space<vmem>>, %arg5: memref<32x3xf32, #tpu.memory_space<vmem>>, %arg6: memref<1x3xf32, #tpu.memory_space<vmem>>, %arg7: memref<2x3xf32, #tpu.memory_space<vmem>>) attributes {dimension_semantics = [#tpu.dimension_semantics<arbitrary>], iteration_bounds = array<i64: 1>, scalar_prefetch = 0 : i64, scratch_operands = 0 : i64, tpu.core_type = #tpu.core_type<tc>, window_params = [{pipeline_mode = #tpu.pipeline_mode<synchronous>, transform_indices = @transform_0, window_bounds = array<i64: 16, 4>}, {pipeline_mode = #tpu.pipeline_mode<synchronous>, transform_indices = @transform_1, window_bounds = array<i64: 4, 128>}, {pipeline_mode = #tpu.pipeline_mode<synchronous>, transform_indices = @transform_2, window_bounds = array<i64: 32, 128>}, {pipeline_mode = #tpu.pipeline_mode<synchronous>, transform_indices = @transform_3, window_bounds = array<i64: 1, 128>}, {pipeline_mode = #tpu.pipeline_mode<synchronous>, transform_indices = @transform_4, window_bounds = array<i64: 32, 3>}, {pipeline_mode = #tpu.pipeline_mode<synchronous>, transform_indices = @transform_5, window_bounds = array<i64: 1, 3>}, {pipeline_mode = #tpu.pipeline_mode<synchronous>, transform_indices = @transform_6, window_bounds = array<i64: 2, 3>}]} {
    %c0 = arith.constant 0 : index
    %c0_0 = arith.constant 0 : index
    %0 = vector.load %arg2[%c0, %c0_0] : memref<4x128xf32, #tpu.memory_space<vmem>>, vector<4x128xf32>
    %c0_1 = arith.constant 0 : index
    %c0_2 = arith.constant 0 : index
    %1 = vector.load %arg3[%c0_1, %c0_2] : memref<32x128xf32, #tpu.memory_space<vmem>>, vector<32x128xf32>
    %c0_3 = arith.constant 0 : index
    %c0_4 = arith.constant 0 : index
    %2 = vector.load %arg4[%c0_3, %c0_4] : memref<1x128xf32, #tpu.memory_space<vmem>>, vector<1x128xf32>
    %c0_5 = arith.constant 0 : index
    %c0_6 = arith.constant 0 : index
    %3 = vector.load %arg1[%c0_5, %c0_6] : memref<16x4xf32, #tpu.memory_space<vmem>>, vector<16x4xf32>
    %cst = arith.constant dense<0.000000e+00> : vector<16x128xf32>
    %4 = tpu.matmul %3, %0, %cst {dimension_numbers = #tpu.dot_dimension_numbers<[1], [0], [0], [1], [0, 0, 1, 1], [], []>} : vector<16x4xf32>, vector<4x128xf32>, vector<16x128xf32> -> vector<16x128xf32>
    %5 = vector.broadcast %2 : vector<1x128xf32> to vector<16x128xf32>
    %6 = arith.addf %4, %5 : vector<16x128xf32>
    %cst_7 = arith.constant 0.000000e+00 : f32
    %7 = vector.broadcast %cst_7 : f32 to vector<2x32xf32>
    %cst_8 = arith.constant 0.000000e+00 : f32
    %8 = vector.broadcast %cst_8 : f32 to vector<2x32xf32>
    %9 = vector.extract_strided_slice %6 {offsets = [0, 0], sizes = [2, 128], strides = [1, 1]} : vector<16x128xf32> to vector<2x128xf32>
    %cst_9 = arith.constant dense<0.000000e+00> : vector<2x128xf32>
    %10 = tpu.matmul %7, %1, %cst_9 {dimension_numbers = #tpu.dot_dimension_numbers<[1], [0], [0], [1], [0, 0, 1, 1], [], []>} : vector<2x32xf32>, vector<32x128xf32>, vector<2x128xf32> -> vector<2x128xf32>
    %11 = arith.addf %9, %10 : vector<2x128xf32>
    %12 = vector.extract_strided_slice %11 {offsets = [0, 0], sizes = [2, 96], strides = [1, 1]} : vector<2x128xf32> to vector<2x96xf32>
    %13 = arith.negf %12 : vector<2x96xf32>
    %14 = math.exp %13 : vector<2x96xf32>
    %cst_10 = arith.constant 1.000000e+00 : f32
    %15 = vector.broadcast %cst_10 : f32 to vector<2x96xf32>
    %16 = arith.addf %15, %14 : vector<2x96xf32>
    %17 = arith.divf %15, %16 : vector<2x96xf32>
    %18 = vector.extract_strided_slice %17 {offsets = [0, 0], sizes = [2, 32], strides = [1, 1]} : vector<2x96xf32> to vector<2x32xf32>
    %19 = vector.extract_strided_slice %17 {offsets = [0, 32], sizes = [2, 32], strides = [1, 1]} : vector<2x96xf32> to vector<2x32xf32>
    %20 = vector.extract_strided_slice %17 {offsets = [0, 64], sizes = [2, 32], strides = [1, 1]} : vector<2x96xf32> to vector<2x32xf32>
    %21 = vector.extract_strided_slice %11 {offsets = [0, 96], sizes = [2, 32], strides = [1, 1]} : vector<2x128xf32> to vector<2x32xf32>
    %22 = math.tanh %21 : vector<2x32xf32>
    %23 = arith.mulf %19, %8 : vector<2x32xf32>
    %24 = arith.mulf %18, %22 : vector<2x32xf32>
    %25 = arith.addf %23, %24 : vector<2x32xf32>
    %26 = math.tanh %25 : vector<2x32xf32>
    %27 = arith.mulf %20, %26 : vector<2x32xf32>
    %28 = vector.extract_strided_slice %6 {offsets = [2, 0], sizes = [2, 128], strides = [1, 1]} : vector<16x128xf32> to vector<2x128xf32>
    %cst_11 = arith.constant dense<0.000000e+00> : vector<2x128xf32>
    %29 = tpu.matmul %27, %1, %cst_11 {dimension_numbers = #tpu.dot_dimension_numbers<[1], [0], [0], [1], [0, 0, 1, 1], [], []>} : vector<2x32xf32>, vector<32x128xf32>, vector<2x128xf32> -> vector<2x128xf32>
    %30 = arith.addf %28, %29 : vector<2x128xf32>
    %31 = vector.extract_strided_slice %30 {offsets = [0, 0], sizes = [2, 96], strides = [1, 1]} : vector<2x128xf32> to vector<2x96xf32>
    %32 = arith.negf %31 : vector<2x96xf32>
    %33 = math.exp %32 : vector<2x96xf32>
    %cst_12 = arith.constant 1.000000e+00 : f32
    %34 = vector.broadcast %cst_12 : f32 to vector<2x96xf32>
    %35 = arith.addf %34, %33 : vector<2x96xf32>
    %36 = arith.divf %34, %35 : vector<2x96xf32>
    %37 = vector.extract_strided_slice %36 {offsets = [0, 0], sizes = [2, 32], strides = [1, 1]} : vector<2x96xf32> to vector<2x32xf32>
    %38 = vector.extract_strided_slice %36 {offsets = [0, 32], sizes = [2, 32], strides = [1, 1]} : vector<2x96xf32> to vector<2x32xf32>
    %39 = vector.extract_strided_slice %36 {offsets = [0, 64], sizes = [2, 32], strides = [1, 1]} : vector<2x96xf32> to vector<2x32xf32>
    %40 = vector.extract_strided_slice %30 {offsets = [0, 96], sizes = [2, 32], strides = [1, 1]} : vector<2x128xf32> to vector<2x32xf32>
    %41 = math.tanh %40 : vector<2x32xf32>
    %42 = arith.mulf %38, %25 : vector<2x32xf32>
    %43 = arith.mulf %37, %41 : vector<2x32xf32>
    %44 = arith.addf %42, %43 : vector<2x32xf32>
    %45 = math.tanh %44 : vector<2x32xf32>
    %46 = arith.mulf %39, %45 : vector<2x32xf32>
    %47 = vector.extract_strided_slice %6 {offsets = [4, 0], sizes = [2, 128], strides = [1, 1]} : vector<16x128xf32> to vector<2x128xf32>
    %cst_13 = arith.constant dense<0.000000e+00> : vector<2x128xf32>
    %48 = tpu.matmul %46, %1, %cst_13 {dimension_numbers = #tpu.dot_dimension_numbers<[1], [0], [0], [1], [0, 0, 1, 1], [], []>} : vector<2x32xf32>, vector<32x128xf32>, vector<2x128xf32> -> vector<2x128xf32>
    %49 = arith.addf %47, %48 : vector<2x128xf32>
    %50 = vector.extract_strided_slice %49 {offsets = [0, 0], sizes = [2, 96], strides = [1, 1]} : vector<2x128xf32> to vector<2x96xf32>
    %51 = arith.negf %50 : vector<2x96xf32>
    %52 = math.exp %51 : vector<2x96xf32>
    %cst_14 = arith.constant 1.000000e+00 : f32
    %53 = vector.broadcast %cst_14 : f32 to vector<2x96xf32>
    %54 = arith.addf %53, %52 : vector<2x96xf32>
    %55 = arith.divf %53, %54 : vector<2x96xf32>
    %56 = vector.extract_strided_slice %55 {offsets = [0, 0], sizes = [2, 32], strides = [1, 1]} : vector<2x96xf32> to vector<2x32xf32>
    %57 = vector.extract_strided_slice %55 {offsets = [0, 32], sizes = [2, 32], strides = [1, 1]} : vector<2x96xf32> to vector<2x32xf32>
    %58 = vector.extract_strided_slice %55 {offsets = [0, 64], sizes = [2, 32], strides = [1, 1]} : vector<2x96xf32> to vector<2x32xf32>
    %59 = vector.extract_strided_slice %49 {offsets = [0, 96], sizes = [2, 32], strides = [1, 1]} : vector<2x128xf32> to vector<2x32xf32>
    %60 = math.tanh %59 : vector<2x32xf32>
    %61 = arith.mulf %57, %44 : vector<2x32xf32>
    %62 = arith.mulf %56, %60 : vector<2x32xf32>
    %63 = arith.addf %61, %62 : vector<2x32xf32>
    %64 = math.tanh %63 : vector<2x32xf32>
    %65 = arith.mulf %58, %64 : vector<2x32xf32>
    %66 = vector.extract_strided_slice %6 {offsets = [6, 0], sizes = [2, 128], strides = [1, 1]} : vector<16x128xf32> to vector<2x128xf32>
    %cst_15 = arith.constant dense<0.000000e+00> : vector<2x128xf32>
    %67 = tpu.matmul %65, %1, %cst_15 {dimension_numbers = #tpu.dot_dimension_numbers<[1], [0], [0], [1], [0, 0, 1, 1], [], []>} : vector<2x32xf32>, vector<32x128xf32>, vector<2x128xf32> -> vector<2x128xf32>
    %68 = arith.addf %66, %67 : vector<2x128xf32>
    %69 = vector.extract_strided_slice %68 {offsets = [0, 0], sizes = [2, 96], strides = [1, 1]} : vector<2x128xf32> to vector<2x96xf32>
    %70 = arith.negf %69 : vector<2x96xf32>
    %71 = math.exp %70 : vector<2x96xf32>
    %cst_16 = arith.constant 1.000000e+00 : f32
    %72 = vector.broadcast %cst_16 : f32 to vector<2x96xf32>
    %73 = arith.addf %72, %71 : vector<2x96xf32>
    %74 = arith.divf %72, %73 : vector<2x96xf32>
    %75 = vector.extract_strided_slice %74 {offsets = [0, 0], sizes = [2, 32], strides = [1, 1]} : vector<2x96xf32> to vector<2x32xf32>
    %76 = vector.extract_strided_slice %74 {offsets = [0, 32], sizes = [2, 32], strides = [1, 1]} : vector<2x96xf32> to vector<2x32xf32>
    %77 = vector.extract_strided_slice %74 {offsets = [0, 64], sizes = [2, 32], strides = [1, 1]} : vector<2x96xf32> to vector<2x32xf32>
    %78 = vector.extract_strided_slice %68 {offsets = [0, 96], sizes = [2, 32], strides = [1, 1]} : vector<2x128xf32> to vector<2x32xf32>
    %79 = math.tanh %78 : vector<2x32xf32>
    %80 = arith.mulf %76, %63 : vector<2x32xf32>
    %81 = arith.mulf %75, %79 : vector<2x32xf32>
    %82 = arith.addf %80, %81 : vector<2x32xf32>
    %83 = math.tanh %82 : vector<2x32xf32>
    %84 = arith.mulf %77, %83 : vector<2x32xf32>
    %85 = vector.extract_strided_slice %6 {offsets = [8, 0], sizes = [2, 128], strides = [1, 1]} : vector<16x128xf32> to vector<2x128xf32>
    %cst_17 = arith.constant dense<0.000000e+00> : vector<2x128xf32>
    %86 = tpu.matmul %84, %1, %cst_17 {dimension_numbers = #tpu.dot_dimension_numbers<[1], [0], [0], [1], [0, 0, 1, 1], [], []>} : vector<2x32xf32>, vector<32x128xf32>, vector<2x128xf32> -> vector<2x128xf32>
    %87 = arith.addf %85, %86 : vector<2x128xf32>
    %88 = vector.extract_strided_slice %87 {offsets = [0, 0], sizes = [2, 96], strides = [1, 1]} : vector<2x128xf32> to vector<2x96xf32>
    %89 = arith.negf %88 : vector<2x96xf32>
    %90 = math.exp %89 : vector<2x96xf32>
    %cst_18 = arith.constant 1.000000e+00 : f32
    %91 = vector.broadcast %cst_18 : f32 to vector<2x96xf32>
    %92 = arith.addf %91, %90 : vector<2x96xf32>
    %93 = arith.divf %91, %92 : vector<2x96xf32>
    %94 = vector.extract_strided_slice %93 {offsets = [0, 0], sizes = [2, 32], strides = [1, 1]} : vector<2x96xf32> to vector<2x32xf32>
    %95 = vector.extract_strided_slice %93 {offsets = [0, 32], sizes = [2, 32], strides = [1, 1]} : vector<2x96xf32> to vector<2x32xf32>
    %96 = vector.extract_strided_slice %93 {offsets = [0, 64], sizes = [2, 32], strides = [1, 1]} : vector<2x96xf32> to vector<2x32xf32>
    %97 = vector.extract_strided_slice %87 {offsets = [0, 96], sizes = [2, 32], strides = [1, 1]} : vector<2x128xf32> to vector<2x32xf32>
    %98 = math.tanh %97 : vector<2x32xf32>
    %99 = arith.mulf %95, %82 : vector<2x32xf32>
    %100 = arith.mulf %94, %98 : vector<2x32xf32>
    %101 = arith.addf %99, %100 : vector<2x32xf32>
    %102 = math.tanh %101 : vector<2x32xf32>
    %103 = arith.mulf %96, %102 : vector<2x32xf32>
    %104 = vector.extract_strided_slice %6 {offsets = [10, 0], sizes = [2, 128], strides = [1, 1]} : vector<16x128xf32> to vector<2x128xf32>
    %cst_19 = arith.constant dense<0.000000e+00> : vector<2x128xf32>
    %105 = tpu.matmul %103, %1, %cst_19 {dimension_numbers = #tpu.dot_dimension_numbers<[1], [0], [0], [1], [0, 0, 1, 1], [], []>} : vector<2x32xf32>, vector<32x128xf32>, vector<2x128xf32> -> vector<2x128xf32>
    %106 = arith.addf %104, %105 : vector<2x128xf32>
    %107 = vector.extract_strided_slice %106 {offsets = [0, 0], sizes = [2, 96], strides = [1, 1]} : vector<2x128xf32> to vector<2x96xf32>
    %108 = arith.negf %107 : vector<2x96xf32>
    %109 = math.exp %108 : vector<2x96xf32>
    %cst_20 = arith.constant 1.000000e+00 : f32
    %110 = vector.broadcast %cst_20 : f32 to vector<2x96xf32>
    %111 = arith.addf %110, %109 : vector<2x96xf32>
    %112 = arith.divf %110, %111 : vector<2x96xf32>
    %113 = vector.extract_strided_slice %112 {offsets = [0, 0], sizes = [2, 32], strides = [1, 1]} : vector<2x96xf32> to vector<2x32xf32>
    %114 = vector.extract_strided_slice %112 {offsets = [0, 32], sizes = [2, 32], strides = [1, 1]} : vector<2x96xf32> to vector<2x32xf32>
    %115 = vector.extract_strided_slice %112 {offsets = [0, 64], sizes = [2, 32], strides = [1, 1]} : vector<2x96xf32> to vector<2x32xf32>
    %116 = vector.extract_strided_slice %106 {offsets = [0, 96], sizes = [2, 32], strides = [1, 1]} : vector<2x128xf32> to vector<2x32xf32>
    %117 = math.tanh %116 : vector<2x32xf32>
    %118 = arith.mulf %114, %101 : vector<2x32xf32>
    %119 = arith.mulf %113, %117 : vector<2x32xf32>
    %120 = arith.addf %118, %119 : vector<2x32xf32>
    %121 = math.tanh %120 : vector<2x32xf32>
    %122 = arith.mulf %115, %121 : vector<2x32xf32>
    %123 = vector.extract_strided_slice %6 {offsets = [12, 0], sizes = [2, 128], strides = [1, 1]} : vector<16x128xf32> to vector<2x128xf32>
    %cst_21 = arith.constant dense<0.000000e+00> : vector<2x128xf32>
    %124 = tpu.matmul %122, %1, %cst_21 {dimension_numbers = #tpu.dot_dimension_numbers<[1], [0], [0], [1], [0, 0, 1, 1], [], []>} : vector<2x32xf32>, vector<32x128xf32>, vector<2x128xf32> -> vector<2x128xf32>
    %125 = arith.addf %123, %124 : vector<2x128xf32>
    %126 = vector.extract_strided_slice %125 {offsets = [0, 0], sizes = [2, 96], strides = [1, 1]} : vector<2x128xf32> to vector<2x96xf32>
    %127 = arith.negf %126 : vector<2x96xf32>
    %128 = math.exp %127 : vector<2x96xf32>
    %cst_22 = arith.constant 1.000000e+00 : f32
    %129 = vector.broadcast %cst_22 : f32 to vector<2x96xf32>
    %130 = arith.addf %129, %128 : vector<2x96xf32>
    %131 = arith.divf %129, %130 : vector<2x96xf32>
    %132 = vector.extract_strided_slice %131 {offsets = [0, 0], sizes = [2, 32], strides = [1, 1]} : vector<2x96xf32> to vector<2x32xf32>
    %133 = vector.extract_strided_slice %131 {offsets = [0, 32], sizes = [2, 32], strides = [1, 1]} : vector<2x96xf32> to vector<2x32xf32>
    %134 = vector.extract_strided_slice %131 {offsets = [0, 64], sizes = [2, 32], strides = [1, 1]} : vector<2x96xf32> to vector<2x32xf32>
    %135 = vector.extract_strided_slice %125 {offsets = [0, 96], sizes = [2, 32], strides = [1, 1]} : vector<2x128xf32> to vector<2x32xf32>
    %136 = math.tanh %135 : vector<2x32xf32>
    %137 = arith.mulf %133, %120 : vector<2x32xf32>
    %138 = arith.mulf %132, %136 : vector<2x32xf32>
    %139 = arith.addf %137, %138 : vector<2x32xf32>
    %140 = math.tanh %139 : vector<2x32xf32>
    %141 = arith.mulf %134, %140 : vector<2x32xf32>
    %142 = vector.extract_strided_slice %6 {offsets = [14, 0], sizes = [2, 128], strides = [1, 1]} : vector<16x128xf32> to vector<2x128xf32>
    %cst_23 = arith.constant dense<0.000000e+00> : vector<2x128xf32>
    %143 = tpu.matmul %141, %1, %cst_23 {dimension_numbers = #tpu.dot_dimension_numbers<[1], [0], [0], [1], [0, 0, 1, 1], [], []>} : vector<2x32xf32>, vector<32x128xf32>, vector<2x128xf32> -> vector<2x128xf32>
    %144 = arith.addf %142, %143 : vector<2x128xf32>
    %145 = vector.extract_strided_slice %144 {offsets = [0, 0], sizes = [2, 96], strides = [1, 1]} : vector<2x128xf32> to vector<2x96xf32>
    %146 = arith.negf %145 : vector<2x96xf32>
    %147 = math.exp %146 : vector<2x96xf32>
    %cst_24 = arith.constant 1.000000e+00 : f32
    %148 = vector.broadcast %cst_24 : f32 to vector<2x96xf32>
    %149 = arith.addf %148, %147 : vector<2x96xf32>
    %150 = arith.divf %148, %149 : vector<2x96xf32>
    %151 = vector.extract_strided_slice %150 {offsets = [0, 0], sizes = [2, 32], strides = [1, 1]} : vector<2x96xf32> to vector<2x32xf32>
    %152 = vector.extract_strided_slice %150 {offsets = [0, 32], sizes = [2, 32], strides = [1, 1]} : vector<2x96xf32> to vector<2x32xf32>
    %153 = vector.extract_strided_slice %150 {offsets = [0, 64], sizes = [2, 32], strides = [1, 1]} : vector<2x96xf32> to vector<2x32xf32>
    %154 = vector.extract_strided_slice %144 {offsets = [0, 96], sizes = [2, 32], strides = [1, 1]} : vector<2x128xf32> to vector<2x32xf32>
    %155 = math.tanh %154 : vector<2x32xf32>
    %156 = arith.mulf %152, %139 : vector<2x32xf32>
    %157 = arith.mulf %151, %155 : vector<2x32xf32>
    %158 = arith.addf %156, %157 : vector<2x32xf32>
    %159 = math.tanh %158 : vector<2x32xf32>
    %160 = arith.mulf %153, %159 : vector<2x32xf32>
    %c0_25 = arith.constant 0 : index
    %c0_26 = arith.constant 0 : index
    %161 = vector.load %arg5[%c0_25, %c0_26] : memref<32x3xf32, #tpu.memory_space<vmem>>, vector<32x3xf32>
    %cst_27 = arith.constant dense<0.000000e+00> : vector<2x3xf32>
    %162 = tpu.matmul %160, %161, %cst_27 {dimension_numbers = #tpu.dot_dimension_numbers<[1], [0], [0], [1], [0, 0, 1, 1], [], []>} : vector<2x32xf32>, vector<32x3xf32>, vector<2x3xf32> -> vector<2x3xf32>
    %c0_28 = arith.constant 0 : index
    %c0_29 = arith.constant 0 : index
    %163 = vector.load %arg6[%c0_28, %c0_29] : memref<1x3xf32, #tpu.memory_space<vmem>>, vector<1x3xf32>
    %164 = vector.broadcast %163 : vector<1x3xf32> to vector<2x3xf32>
    %165 = arith.addf %162, %164 : vector<2x3xf32>
    %166 = arith.negf %165 : vector<2x3xf32>
    %167 = math.exp %166 : vector<2x3xf32>
    %cst_30 = arith.constant 1.000000e+00 : f32
    %168 = vector.broadcast %cst_30 : f32 to vector<2x3xf32>
    %169 = arith.addf %168, %167 : vector<2x3xf32>
    %170 = arith.divf %168, %169 : vector<2x3xf32>
    %c0_31 = arith.constant 0 : index
    %c0_32 = arith.constant 0 : index
    %171 = vector.load %arg7[%c0_31, %c0_32] : memref<2x3xf32, #tpu.memory_space<vmem>>, vector<2x3xf32>
    tpu.vector_store %arg7[%c0_31, %c0_32], %170 {strides = array<i32>} : memref<2x3xf32, #tpu.memory_space<vmem>>, vector<2x3xf32>,
    return
  }
  func.func @transform_0(%arg0: i32) -> (i32, i32) {
    %c0_i32 = arith.constant 0 : i32
    %c0_i32_0 = arith.constant 0 : i32
    %c0_i32_1 = arith.constant 0 : i32
    return %c0_i32, %c0_i32_0 : i32, i32
  }
  func.func @transform_1(%arg0: i32) -> (i32, i32) {
    %c0_i32 = arith.constant 0 : i32
    %c0_i32_0 = arith.constant 0 : i32
    %c0_i32_1 = arith.constant 0 : i32
    return %c0_i32, %c0_i32_0 : i32, i32
  }
  func.func @transform_2(%arg0: i32) -> (i32, i32) {
    %c0_i32 = arith.constant 0 : i32
    %c0_i32_0 = arith.constant 0 : i32
    %c0_i32_1 = arith.constant 0 : i32
    return %c0_i32, %c0_i32_0 : i32, i32
  }
  func.func @transform_3(%arg0: i32) -> (i32, i32) {
    %c0_i32 = arith.constant 0 : i32
    %c0_i32_0 = arith.constant 0 : i32
    %c0_i32_1 = arith.constant 0 : i32
    return %c0_i32, %c0_i32_0 : i32, i32
  }
  func.func @transform_4(%arg0: i32) -> (i32, i32) {
    %c0_i32 = arith.constant 0 : i32
    %c0_i32_0 = arith.constant 0 : i32
    %c0_i32_1 = arith.constant 0 : i32
    return %c0_i32, %c0_i32_0 : i32, i32
  }
  func.func @transform_5(%arg0: i32) -> (i32, i32) {
    %c0_i32 = arith.constant 0 : i32
    %c0_i32_0 = arith.constant 0 : i32
    %c0_i32_1 = arith.constant 0 : i32
    return %c0_i32, %c0_i32_0 : i32, i32
  }
  func.func @transform_6(%arg0: i32) -> (i32, i32) {
    %c0_i32 = arith.constant 0 : i32
    %c0_i32_0 = arith.constant 0 : i32
    %c0_i32_1 = arith.constant 0 : i32
    return %c0_i32, %c0_i32_0 : i32, i32
  }
}

</mosaic_0001>

<llo_original>
// kernel: simple_rnn_classification.1
$region0: #{simple_rnn_classification.1}
  #allocation0 [shape = 'u32[]', space=smem, size = 0x4, offset = 0x4, fixed_abs, tag = 'smem constant byte address 0x4 - core index']
  #allocation1 [shape = 'u32[144,128]{1,0:T(1,128)}', space=vmem, size = 0x12000, scoped, tag = 'internal scratch']
  %s0 = inlined_call_operand.vmem [shape: f32[16,4], index: 0, kind: input, shape index: {}]
  %s1 = inlined_call_operand.vmem [shape: f32[4,128], index: 1, kind: input, shape index: {}]
  %s2 = inlined_call_operand.vmem [shape: f32[32,128], index: 2, kind: input, shape index: {}]
  %s3 = inlined_call_operand.vmem [shape: f32[1,128], index: 3, kind: input, shape index: {}]
  %s4 = inlined_call_operand.vmem [shape: f32[32,3], index: 4, kind: input, shape index: {}]
  %s5 = inlined_call_operand.vmem [shape: f32[1,3], index: 5, kind: input, shape index: {}]
  %s6 = inlined_call_operand.hbm [shape: f32[2,3], index: 6, kind: output, shape index: {}]
  %s7 = sld [smem:[#allocation0]]
  $region34: #{simple_rnn_classification.1} parent=0
    _
  %s9 = ssub.s32 1, %s7
  %s10 = scalar_select 0, %s9, %s7
  $region1: #{simple_rnn_classification.1} parent=0
    #allocation2 [shape = 'u8[1024]{0}', space=vmem, size = 0x400, scoped, tag = 'output window, operand 0, single buffered']
    #allocation3 [shape = 's32[1]{0}', space=sflag, size = 0x4, scoped, tag = 'scoped memory for simple_rnn_classification.1']
    %11 = vsyncpa [#allocation3], 0
    // Predicated region
    $region2: #{simple_rnn_classification.1} parent=1 // pred_check
      _
    $region3: #{simple_rnn_classification.1} parent=1 // pred_check_branch
      %13 = sbr.rel (0) target = $region5
    $region4: #{simple_rnn_classification.1} parent=1 // pred_region
      _
    $region5: #{simple_rnn_classification.1} parent=1 // pred_fallthru
      _
    // Predicated region
    $region6: #{simple_rnn_classification.1} parent=1 // pred_check
      _
    $region7: #{simple_rnn_classification.1} parent=1 // pred_check_branch
      %15 = sbr.rel (0) target = $region9
    $region8: #{simple_rnn_classification.1} parent=1 // pred_region
      _
    $region9: #{simple_rnn_classification.1} parent=1 // pred_fallthru
      _
    // Predicated region
    $region10: #{simple_rnn_classification.1} parent=1 // pred_check
      _
    $region11: #{simple_rnn_classification.1} parent=1 // pred_check_branch
      %17 = sbr.rel (0) target = $region13
    $region12: #{simple_rnn_classification.1} parent=1 // pred_region
      _
    $region13: #{simple_rnn_classification.1} parent=1 // pred_fallthru
      _
    // Predicated region
    $region14: #{simple_rnn_classification.1} parent=1 // pred_check
      _
    $region15: #{simple_rnn_classification.1} parent=1 // pred_check_branch
      %19 = sbr.rel (0) target = $region17
    $region16: #{simple_rnn_classification.1} parent=1 // pred_region
      _
    $region17: #{simple_rnn_classification.1} parent=1 // pred_fallthru
      _
    // Predicated region
    $region18: #{simple_rnn_classification.1} parent=1 // pred_check
      _
    $region19: #{simple_rnn_classification.1} parent=1 // pred_check_branch
      %21 = sbr.rel (0) target = $region21
    $region20: #{simple_rnn_classification.1} parent=1 // pred_region
      _
    $region21: #{simple_rnn_classification.1} parent=1 // pred_fallthru
      _
    // Predicated region
    $region22: #{simple_rnn_classification.1} parent=1 // pred_check
      _
    $region23: #{simple_rnn_classification.1} parent=1 // pred_check_branch
      %23 = sbr.rel (0) target = $region25
    $region24: #{simple_rnn_classification.1} parent=1 // pred_region
      _
    $region25: #{simple_rnn_classification.1} parent=1 // pred_fallthru
      _
    %v24 = vld [vmem:[%s1] sm:$0xf]
    %v25 = vld [vmem:[%s2] sm:$0xff]
    %v26 = vld [vmem:[%s2 + $0x8] sm:$0xff]
    %v27 = vld [vmem:[%s2 + $0x10] sm:$0xff]
    %v28 = vld [vmem:[%s2 + $0x18] sm:$0xff]
    %v29 = vld [vmem:[%s3] sm:$0x1]
    %v30 = vld [vmem:[%s0] sm:$0xff]
    %v31 = vld [vmem:[%s0 + $0x8] sm:$0xff]
    %v33 = vlaneseq
    %v34 = vshrl.u32 %v33, 7
    %v35 = vsub.s32 0, %v34
    %v36 = vrot.slane %v29, %v35
    %vm38 = vcmask 31744
    %v40 = vsel %vm38, %v30, 0
    %v43 = vsel %vm38, %v31, 0
    %vm45 = vcmask 1043456
    %v47 = vsel %vm45, %v24, 0
    %49 = vmatprep.subr.mxu0 0.0
    %50 = vmatpush1.msra.mxu0 0.0
    %51 = vmatprep.subr.mxu0 0.0
    %52 = vmatpush1.msra.mxu0 0.0
    %53 = vmatprep.subr.mxu0 0.0
    %54 = vmatpush1.msra.mxu0 0.0
    %55 = vmatprep.subr.mxu0 0.0
    %56 = vmatpush1.msra.mxu0 0.0
    %57 = vmatprep.subr.mxu0 0.0
    %58 = vmatpush1.msra.mxu0 0.0
    %59 = vmatprep.subr.mxu0 0.0
    %60 = vmatpush1.msra.mxu0 0.0
    %61 = vmatprep.subr.mxu0 0.0
    %62 = vmatpush1.msra.mxu0 0.0
    %63 = vmatprep.subr.mxu0 0.0
    %64 = vmatpush1.msra.mxu0 0.0
    %65 = vmatprep.subr.mxu0 0.0
    %66 = vmatpush1.msra.mxu0 0.0
    %67 = vmatprep.subr.mxu0 0.0
    %68 = vmatpush1.msra.mxu0 0.0
    %69 = vmatprep.subr.mxu0 0.0
    %70 = vmatpush1.msra.mxu0 0.0
    %71 = vmatprep.subr.mxu0 0.0
    %72 = vmatpush1.msra.mxu0 0.0
    %73 = vmatprep.subr.mxu0 0.0
    %74 = vmatpush1.msra.mxu0 0.0
    %75 = vmatprep.subr.mxu0 0.0
    %76 = vmatpush1.msra.mxu0 0.0
    %77 = vmatprep.subr.mxu0 0.0
    %78 = vmatpush1.msra.mxu0 0.0
    %79 = vmatprep.subr.mxu0 0.0
    %80 = vmatpush1.msra.mxu0 %v47
    %81 = vmatprep.subr.mxu0 0.0
    %82 = vmatpush2.msra.mxu0 0.0
    %83 = vmatprep.subr.mxu0 0.0
    %84 = vmatpush2.msra.mxu0 0.0
    %85 = vmatprep.subr.mxu0 0.0
    %86 = vmatpush2.msra.mxu0 0.0
    %87 = vmatprep.subr.mxu0 0.0
    %88 = vmatpush2.msra.mxu0 0.0
    %89 = vmatprep.subr.mxu0 0.0
    %90 = vmatpush2.msra.mxu0 0.0
    %91 = vmatprep.subr.mxu0 0.0
    %92 = vmatpush2.msra.mxu0 0.0
    %93 = vmatprep.subr.mxu0 0.0
    %94 = vmatpush2.msra.mxu0 0.0
    %95 = vmatprep.subr.mxu0 0.0
    %96 = vmatpush2.msra.mxu0 0.0
    %97 = vmatprep.subr.mxu0 0.0
    %98 = vmatpush2.msra.mxu0 0.0
    %99 = vmatprep.subr.mxu0 0.0
    %100 = vmatpush2.msra.mxu0 0.0
    %101 = vmatprep.subr.mxu0 0.0
    %102 = vmatpush2.msra.mxu0 0.0
    %103 = vmatprep.subr.mxu0 0.0
    %104 = vmatpush2.msra.mxu0 0.0
    %105 = vmatprep.subr.mxu0 0.0
    %106 = vmatpush2.msra.mxu0 0.0
    %107 = vmatprep.subr.mxu0 0.0
    %108 = vmatpush2.msra.mxu0 0.0
    %109 = vmatprep.subr.mxu0 0.0
    %110 = vmatpush2.msra.mxu0 0.0
    %111 = vmatprep.subr.mxu0 0.0
    %112 = vmatpush2.msra.mxu0 0.0
    %113 = vmatprep.mubr.f32.mxu0 0.0
    %114 = vmatmul.mubr.f32.gmra.mxu0 %v40
    %v115 = vpop.f32.mrf.mxu0
    %v116 = vadd.f32 %v36, %v115
    %v117 = vpop.f32.mrf.mxu0
    %118 = vmatprep.mubr.f32.mxu0 0.0
    %119 = vmatmul.mubr.f32.gmra.mxu0 %v43
    %v120 = vpop.f32.mrf.mxu0
    %v121 = vadd.f32 %v36, %v120
    %v122 = vpop.f32.mrf.mxu0
    %123 = vdwg.mxu0
    %vm124 = vcmask 261120
    %v126 = vsel %vm124, 0.0, 0
    %128 = vmatprep.subr.mxu0 0.0
    %129 = vmatpush1.msra.mxu0 0.0
    %130 = vmatprep.subr.mxu0 0.0
    %131 = vmatpush1.msra.mxu0 0.0
    %132 = vmatprep.subr.mxu0 0.0
    %133 = vmatpush1.msra.mxu0 0.0
    %134 = vmatprep.subr.mxu0 0.0
    %135 = vmatpush1.msra.mxu0 0.0
    %136 = vmatprep.subr.mxu0 0.0
    %137 = vmatpush1.msra.mxu0 0.0
    %138 = vmatprep.subr.mxu0 0.0
    %139 = vmatpush1.msra.mxu0 0.0
    %140 = vmatprep.subr.mxu0 0.0
    %141 = vmatpush1.msra.mxu0 0.0
    %142 = vmatprep.subr.mxu0 0.0
    %143 = vmatpush1.msra.mxu0 0.0
    %144 = vmatprep.subr.mxu0 0.0
    %145 = vmatpush1.msra.mxu0 0.0
    %146 = vmatprep.subr.mxu0 0.0
    %147 = vmatpush1.msra.mxu0 0.0
    %148 = vmatprep.subr.mxu0 0.0
    %149 = vmatpush1.msra.mxu0 0.0
    %150 = vmatprep.subr.mxu0 0.0
    %151 = vmatpush1.msra.mxu0 0.0
    %152 = vmatprep.subr.mxu0 0.0
    %153 = vmatpush1.msra.mxu0 %v28
    %154 = vmatprep.subr.mxu0 0.0
    %155 = vmatpush1.msra.mxu0 %v27
    %156 = vmatprep.subr.mxu0 0.0
    %157 = vmatpush1.msra.mxu0 %v26
    %158 = vmatprep.subr.mxu0 0.0
    %159 = vmatpush1.msra.mxu0 %v25
    %160 = vmatprep.subr.mxu0 0.0
    %161 = vmatpush2.msra.mxu0 0.0
    %162 = vmatprep.subr.mxu0 0.0
    %163 = vmatpush2.msra.mxu0 0.0
    %164 = vmatprep.subr.mxu0 0.0
    %165 = vmatpush2.msra.mxu0 0.0
    %166 = vmatprep.subr.mxu0 0.0
    %167 = vmatpush2.msra.mxu0 0.0
    %168 = vmatprep.subr.mxu0 0.0
    %169 = vmatpush2.msra.mxu0 0.0
    %170 = vmatprep.subr.mxu0 0.0
    %171 = vmatpush2.msra.mxu0 0.0
    %172 = vmatprep.subr.mxu0 0.0
    %173 = vmatpush2.msra.mxu0 0.0
    %174 = vmatprep.subr.mxu0 0.0
    %175 = vmatpush2.msra.mxu0 0.0
    %176 = vmatprep.subr.mxu0 0.0
    %177 = vmatpush2.msra.mxu0 0.0
    %178 = vmatprep.subr.mxu0 0.0
    %179 = vmatpush2.msra.mxu0 0.0
    %180 = vmatprep.subr.mxu0 0.0
    %181 = vmatpush2.msra.mxu0 0.0
    %182 = vmatprep.subr.mxu0 0.0
    %183 = vmatpush2.msra.mxu0 0.0
    %184 = vmatprep.subr.mxu0 0.0
    %185 = vmatpush2.msra.mxu0 0.0
    %186 = vmatprep.subr.mxu0 0.0
    %187 = vmatpush2.msra.mxu0 0.0
    %188 = vmatprep.subr.mxu0 0.0
    %189 = vmatpush2.msra.mxu0 0.0
    %190 = vmatprep.subr.mxu0 0.0
    %191 = vmatpush2.msra.mxu0 0.0
    %192 = vmatprep.mubr.f32.mxu0 0.0
    %193 = vmatmul.mubr.f32.gmra.mxu0 %v126
    %v194 = vpop.f32.mrf.mxu0
    %v195 = vadd.f32 0.0, %v194
    %v196 = vpop.f32.mrf.mxu0
    %197 = vdwg.mxu0
    %v198 = vadd.f32 %v116, %v195
    %v199 = vxor.u32 %v198, 2147483648
    %v200 = vmul.f32 %v199, 1.442695
    %v201 = vpow.pop %v200
    %v202 = vadd.f32 %v201, 1.0
    %v203 = vrcp.pop %v202
    %v204 = vmul.f32 1.0, %v203
    %v205 = vtanh.pop %v198
    %v206 = vmul.f32 %v204, 0.0
    %208 = vrot.lane.b32.xlu0 %v205, 32
    %v209 = vpop.permute.xlu0 %208
    %v211 = vmul.f32 %v204, %v209
    %213 = vrot.lane.b32.xlu0 %v211, 32
    %v214 = vpop.permute.xlu0 %213
    %v216 = vadd.f32 %v206, %v214
    %v217 = vtanh.pop %v216
    %219 = vrot.lane.b32.xlu0 %v217, 32
    %v220 = vpop.permute.xlu0 %219
    %v222 = vmul.f32 %v204, %v220
    %224 = vrot.lane.b32.xlu0 %v222, 64
    %v225 = vpop.permute.xlu0 %224
    %v226 = vsel %vm124, %v225, 0
    %228 = vmatprep.subr.mxu0 0.0
    %229 = vmatpush1.msra.mxu0 0.0
    %230 = vmatprep.subr.mxu0 0.0
    %231 = vmatpush1.msra.mxu0 0.0
    %232 = vmatprep.subr.mxu0 0.0
    %233 = vmatpush1.msra.mxu0 0.0
    %234 = vmatprep.subr.mxu0 0.0
    %235 = vmatpush1.msra.mxu0 0.0
    %236 = vmatprep.subr.mxu0 0.0
    %237 = vmatpush1.msra.mxu0 0.0
    %238 = vmatprep.subr.mxu0 0.0
    %239 = vmatpush1.msra.mxu0 0.0
    %240 = vmatprep.subr.mxu0 0.0
    %241 = vmatpush1.msra.mxu0 0.0
    %242 = vmatprep.subr.mxu0 0.0
    %243 = vmatpush1.msra.mxu0 0.0
    %244 = vmatprep.subr.mxu0 0.0
    %245 = vmatpush1.msra.mxu0 0.0
    %246 = vmatprep.subr.mxu0 0.0
    %247 = vmatpush1.msra.mxu0 0.0
    %248 = vmatprep.subr.mxu0 0.0
    %249 = vmatpush1.msra.mxu0 0.0
    %250 = vmatprep.subr.mxu0 0.0
    %251 = vmatpush1.msra.mxu0 0.0
    %252 = vmatprep.subr.mxu0 0.0
    %253 = vmatpush1.msra.mxu0 %v28
    %254 = vmatprep.subr.mxu0 0.0
    %255 = vmatpush1.msra.mxu0 %v27
    %256 = vmatprep.subr.mxu0 0.0
    %257 = vmatpush1.msra.mxu0 %v26
    %258 = vmatprep.subr.mxu0 0.0
    %259 = vmatpush1.msra.mxu0 %v25
    %260 = vmatprep.subr.mxu0 0.0
    %261 = vmatpush2.msra.mxu0 0.0
    %262 = vmatprep.subr.mxu0 0.0
    %263 = vmatpush2.msra.mxu0 0.0
    %264 = vmatprep.subr.mxu0 0.0
    %265 = vmatpush2.msra.mxu0 0.0
    %266 = vmatprep.subr.mxu0 0.0
    %267 = vmatpush2.msra.mxu0 0.0
    %268 = vmatprep.subr.mxu0 0.0
    %269 = vmatpush2.msra.mxu0 0.0
    %270 = vmatprep.subr.mxu0 0.0
    %271 = vmatpush2.msra.mxu0 0.0
    %272 = vmatprep.subr.mxu0 0.0
    %273 = vmatpush2.msra.mxu0 0.0
    %274 = vmatprep.subr.mxu0 0.0
    %275 = vmatpush2.msra.mxu0 0.0
    %276 = vmatprep.subr.mxu0 0.0
    %277 = vmatpush2.msra.mxu0 0.0
    %278 = vmatprep.subr.mxu0 0.0
    %279 = vmatpush2.msra.mxu0 0.0
    %280 = vmatprep.subr.mxu0 0.0
    %281 = vmatpush2.msra.mxu0 0.0
    %282 = vmatprep.subr.mxu0 0.0
    %283 = vmatpush2.msra.mxu0 0.0
    %284 = vmatprep.subr.mxu0 0.0
    %285 = vmatpush2.msra.mxu0 0.0
    %286 = vmatprep.subr.mxu0 0.0
    %287 = vmatpush2.msra.mxu0 0.0
    %288 = vmatprep.subr.mxu0 0.0
    %289 = vmatpush2.msra.mxu0 0.0
    %290 = vmatprep.subr.mxu0 0.0
    %291 = vmatpush2.msra.mxu0 0.0
    %292 = vmatprep.mubr.f32.mxu0 0.0
    %293 = vmatmul.mubr.f32.gmra.mxu0 %v226
    %v294 = vpop.f32.mrf.mxu0
    %v295 = vadd.f32 0.0, %v294
    %v296 = vpop.f32.mrf.mxu0
    %297 = vdwg.mxu0
    %v299 = vrot.slane %v295, 6
    %v301 = vadd.f32 %v116, %v299
    %v302 = vxor.u32 %v301, 2147483648
    %v303 = vmul.f32 %v302, 1.442695
    %v304 = vpow.pop %v303
    %v305 = vadd.f32 %v304, 1.0
    %v306 = vrcp.pop %v305
    %v307 = vmul.f32 1.0, %v306
    %v308 = vtanh.pop %v301
    %v310 = vrot.slane %v216, 6
    %v312 = vmul.f32 %v307, %v310
    %314 = vrot.lane.b32.xlu0 %v308, 32
    %v315 = vpop.permute.xlu0 %314
    %v317 = vmul.f32 %v307, %v315
    %319 = vrot.lane.b32.xlu0 %v317, 32
    %v320 = vpop.permute.xlu0 %319
    %v322 = vadd.f32 %v312, %v320
    %v323 = vtanh.pop %v322
    %325 = vrot.lane.b32.xlu0 %v323, 32
    %v326 = vpop.permute.xlu0 %325
    %v328 = vmul.f32 %v307, %v326
    %v330 = vrot.slane %v328, 2
    %331 = vrot.lane.b32.xlu0 %v330, 64
    %v332 = vpop.permute.xlu0 %331
    %v333 = vsel %vm124, %v332, 0
    %335 = vmatprep.subr.mxu0 0.0
    %336 = vmatpush1.msra.mxu0 0.0
    %337 = vmatprep.subr.mxu0 0.0
    %338 = vmatpush1.msra.mxu0 0.0
    %339 = vmatprep.subr.mxu0 0.0
    %340 = vmatpush1.msra.mxu0 0.0
    %341 = vmatprep.subr.mxu0 0.0
    %342 = vmatpush1.msra.mxu0 0.0
    %343 = vmatprep.subr.mxu0 0.0
    %344 = vmatpush1.msra.mxu0 0.0
    %345 = vmatprep.subr.mxu0 0.0
    %346 = vmatpush1.msra.mxu0 0.0
    %347 = vmatprep.subr.mxu0 0.0
    %348 = vmatpush1.msra.mxu0 0.0
    %349 = vmatprep.subr.mxu0 0.0
    %350 = vmatpush1.msra.mxu0 0.0
    %351 = vmatprep.subr.mxu0 0.0
    %352 = vmatpush1.msra.mxu0 0.0
    %353 = vmatprep.subr.mxu0 0.0
    %354 = vmatpush1.msra.mxu0 0.0
    %355 = vmatprep.subr.mxu0 0.0
    %356 = vmatpush1.msra.mxu0 0.0
    %357 = vmatprep.subr.mxu0 0.0
    %358 = vmatpush1.msra.mxu0 0.0
    %359 = vmatprep.subr.mxu0 0.0
    %360 = vmatpush1.msra.mxu0 %v28
    %361 = vmatprep.subr.mxu0 0.0
    %362 = vmatpush1.msra.mxu0 %v27
    %363 = vmatprep.subr.mxu0 0.0
    %364 = vmatpush1.msra.mxu0 %v26
    %365 = vmatprep.subr.mxu0 0.0
    %366 = vmatpush1.msra.mxu0 %v25
    %367 = vmatprep.subr.mxu0 0.0
    %368 = vmatpush2.msra.mxu0 0.0
    %369 = vmatprep.subr.mxu0 0.0
    %370 = vmatpush2.msra.mxu0 0.0
    %371 = vmatprep.subr.mxu0 0.0
    %372 = vmatpush2.msra.mxu0 0.0
    %373 = vmatprep.subr.mxu0 0.0
    %374 = vmatpush2.msra.mxu0 0.0
    %375 = vmatprep.subr.mxu0 0.0
    %376 = vmatpush2.msra.mxu0 0.0
    %377 = vmatprep.subr.mxu0 0.0
    %378 = vmatpush2.msra.mxu0 0.0
    %379 = vmatprep.subr.mxu0 0.0
    %380 = vmatpush2.msra.mxu0 0.0
    %381 = vmatprep.subr.mxu0 0.0
    %382 = vmatpush2.msra.mxu0 0.0
    %383 = vmatprep.subr.mxu0 0.0
    %384 = vmatpush2.msra.mxu0 0.0
    %385 = vmatprep.subr.mxu0 0.0
    %386 = vmatpush2.msra.mxu0 0.0
    %387 = vmatprep.subr.mxu0 0.0
    %388 = vmatpush2.msra.mxu0 0.0
    %389 = vmatprep.subr.mxu0 0.0
    %390 = vmatpush2.msra.mxu0 0.0
    %391 = vmatprep.subr.mxu0 0.0
    %392 = vmatpush2.msra.mxu0 0.0
    %393 = vmatprep.subr.mxu0 0.0
    %394 = vmatpush2.msra.mxu0 0.0
    %395 = vmatprep.subr.mxu0 0.0
    %396 = vmatpush2.msra.mxu0 0.0
    %397 = vmatprep.subr.mxu0 0.0
    %398 = vmatpush2.msra.mxu0 0.0
    %399 = vmatprep.mubr.f32.mxu0 0.0
    %400 = vmatmul.mubr.f32.gmra.mxu0 %v333
    %v401 = vpop.f32.mrf.mxu0
    %v402 = vadd.f32 0.0, %v401
    %v403 = vpop.f32.mrf.mxu0
    %404 = vdwg.mxu0
    %v406 = vrot.slane %v402, 4
    %v408 = vadd.f32 %v116, %v406
    %v409 = vxor.u32 %v408, 2147483648
    %v410 = vmul.f32 %v409, 1.442695
    %v411 = vpow.pop %v410
    %v412 = vadd.f32 %v411, 1.0
    %v413 = vrcp.pop %v412
    %v414 = vmul.f32 1.0, %v413
    %v415 = vtanh.pop %v408
    %v417 = vrot.slane %v322, 6
    %v419 = vmul.f32 %v414, %v417
    %421 = vrot.lane.b32.xlu0 %v415, 32
    %v422 = vpop.permute.xlu0 %421
    %v424 = vmul.f32 %v414, %v422
    %426 = vrot.lane.b32.xlu0 %v424, 32
    %v427 = vpop.permute.xlu0 %426
    %v429 = vadd.f32 %v419, %v427
    %v430 = vtanh.pop %v429
    %432 = vrot.lane.b32.xlu0 %v430, 32
    %v433 = vpop.permute.xlu0 %432
    %v435 = vmul.f32 %v414, %v433
    %v437 = vrot.slane %v435, 4
    %438 = vrot.lane.b32.xlu0 %v437, 64
    %v439 = vpop.permute.xlu0 %438
    %v440 = vsel %vm124, %v439, 0
    %442 = vmatprep.subr.mxu0 0.0
    %443 = vmatpush1.msra.mxu0 0.0
    %444 = vmatprep.subr.mxu0 0.0
    %445 = vmatpush1.msra.mxu0 0.0
    %446 = vmatprep.subr.mxu0 0.0
    %447 = vmatpush1.msra.mxu0 0.0
    %448 = vmatprep.subr.mxu0 0.0
    %449 = vmatpush1.msra.mxu0 0.0
    %450 = vmatprep.subr.mxu0 0.0
    %451 = vmatpush1.msra.mxu0 0.0
    %452 = vmatprep.subr.mxu0 0.0
    %453 = vmatpush1.msra.mxu0 0.0
    %454 = vmatprep.subr.mxu0 0.0
    %455 = vmatpush1.msra.mxu0 0.0
    %456 = vmatprep.subr.mxu0 0.0
    %457 = vmatpush1.msra.mxu0 0.0
    %458 = vmatprep.subr.mxu0 0.0
    %459 = vmatpush1.msra.mxu0 0.0
    %460 = vmatprep.subr.mxu0 0.0
    %461 = vmatpush1.msra.mxu0 0.0
    %462 = vmatprep.subr.mxu0 0.0
    %463 = vmatpush1.msra.mxu0 0.0
    %464 = vmatprep.subr.mxu0 0.0
    %465 = vmatpush1.msra.mxu0 0.0
    %466 = vmatprep.subr.mxu0 0.0
    %467 = vmatpush1.msra.mxu0 %v28
    %468 = vmatprep.subr.mxu0 0.0
    %469 = vmatpush1.msra.mxu0 %v27
    %470 = vmatprep.subr.mxu0 0.0
    %471 = vmatpush1.msra.mxu0 %v26
    %472 = vmatprep.subr.mxu0 0.0
    %473 = vmatpush1.msra.mxu0 %v25
    %474 = vmatprep.subr.mxu0 0.0
    %475 = vmatpush2.msra.mxu0 0.0
    %476 = vmatprep.subr.mxu0 0.0
    %477 = vmatpush2.msra.mxu0 0.0
    %478 = vmatprep.subr.mxu0 0.0
    %479 = vmatpush2.msra.mxu0 0.0
    %480 = vmatprep.subr.mxu0 0.0
    %481 = vmatpush2.msra.mxu0 0.0
    %482 = vmatprep.subr.mxu0 0.0
    %483 = vmatpush2.msra.mxu0 0.0
    %484 = vmatprep.subr.mxu0 0.0
    %485 = vmatpush2.msra.mxu0 0.0
    %486 = vmatprep.subr.mxu0 0.0
    %487 = vmatpush2.msra.mxu0 0.0
    %488 = vmatprep.subr.mxu0 0.0
    %489 = vmatpush2.msra.mxu0 0.0
    %490 = vmatprep.subr.mxu0 0.0
    %491 = vmatpush2.msra.mxu0 0.0
    %492 = vmatprep.subr.mxu0 0.0
    %493 = vmatpush2.msra.mxu0 0.0
    %494 = vmatprep.subr.mxu0 0.0
    %495 = vmatpush2.msra.mxu0 0.0
    %496 = vmatprep.subr.mxu0 0.0
    %497 = vmatpush2.msra.mxu0 0.0
    %498 = vmatprep.subr.mxu0 0.0
    %499 = vmatpush2.msra.mxu0 0.0
    %500 = vmatprep.subr.mxu0 0.0
    %501 = vmatpush2.msra.mxu0 0.0
    %502 = vmatprep.subr.mxu0 0.0
    %503 = vmatpush2.msra.mxu0 0.0
    %504 = vmatprep.subr.mxu0 0.0
    %505 = vmatpush2.msra.mxu0 0.0
    %506 = vmatprep.mubr.f32.mxu0 0.0
    %507 = vmatmul.mubr.f32.gmra.mxu0 %v440
    %v508 = vpop.f32.mrf.mxu0
    %v509 = vadd.f32 0.0, %v508
    %v510 = vpop.f32.mrf.mxu0
    %511 = vdwg.mxu0
    %v513 = vrot.slane %v509, 2
    %v515 = vadd.f32 %v116, %v513
    %v516 = vxor.u32 %v515, 2147483648
    %v517 = vmul.f32 %v516, 1.442695
    %v518 = vpow.pop %v517
    %v519 = vadd.f32 %v518, 1.0
    %v520 = vrcp.pop %v519
    %v521 = vmul.f32 1.0, %v520
    %v522 = vtanh.pop %v515
    %v524 = vrot.slane %v429, 6
    %v526 = vmul.f32 %v521, %v524
    %528 = vrot.lane.b32.xlu0 %v522, 32
    %v529 = vpop.permute.xlu0 %528
    %v531 = vmul.f32 %v521, %v529
    %533 = vrot.lane.b32.xlu0 %v531, 32
    %v534 = vpop.permute.xlu0 %533
    %v536 = vadd.f32 %v526, %v534
    %v537 = vtanh.pop %v536
    %539 = vrot.lane.b32.xlu0 %v537, 32
    %v540 = vpop.permute.xlu0 %539
    %v542 = vmul.f32 %v521, %v540
    %v544 = vrot.slane %v542, 6
    %545 = vrot.lane.b32.xlu0 %v544, 64
    %v546 = vpop.permute.xlu0 %545
    %v547 = vsel %vm124, %v546, 0
    %549 = vmatprep.subr.mxu0 0.0
    %550 = vmatpush1.msra.mxu0 0.0
    %551 = vmatprep.subr.mxu0 0.0
    %552 = vmatpush1.msra.mxu0 0.0
    %553 = vmatprep.subr.mxu0 0.0
    %554 = vmatpush1.msra.mxu0 0.0
    %555 = vmatprep.subr.mxu0 0.0
    %556 = vmatpush1.msra.mxu0 0.0
    %557 = vmatprep.subr.mxu0 0.0
    %558 = vmatpush1.msra.mxu0 0.0
    %559 = vmatprep.subr.mxu0 0.0
    %560 = vmatpush1.msra.mxu0 0.0
    %561 = vmatprep.subr.mxu0 0.0
    %562 = vmatpush1.msra.mxu0 0.0
    %563 = vmatprep.subr.mxu0 0.0
    %564 = vmatpush1.msra.mxu0 0.0
    %565 = vmatprep.subr.mxu0 0.0
    %566 = vmatpush1.msra.mxu0 0.0
    %567 = vmatprep.subr.mxu0 0.0
    %568 = vmatpush1.msra.mxu0 0.0
    %569 = vmatprep.subr.mxu0 0.0
    %570 = vmatpush1.msra.mxu0 0.0
    %571 = vmatprep.subr.mxu0 0.0
    %572 = vmatpush1.msra.mxu0 0.0
    %573 = vmatprep.subr.mxu0 0.0
    %574 = vmatpush1.msra.mxu0 %v28
    %575 = vmatprep.subr.mxu0 0.0
    %576 = vmatpush1.msra.mxu0 %v27
    %577 = vmatprep.subr.mxu0 0.0
    %578 = vmatpush1.msra.mxu0 %v26
    %579 = vmatprep.subr.mxu0 0.0
    %580 = vmatpush1.msra.mxu0 %v25
    %581 = vmatprep.subr.mxu0 0.0
    %582 = vmatpush2.msra.mxu0 0.0
    %583 = vmatprep.subr.mxu0 0.0
    %584 = vmatpush2.msra.mxu0 0.0
    %585 = vmatprep.subr.mxu0 0.0
    %586 = vmatpush2.msra.mxu0 0.0
    %587 = vmatprep.subr.mxu0 0.0
    %588 = vmatpush2.msra.mxu0 0.0
    %589 = vmatprep.subr.mxu0 0.0
    %590 = vmatpush2.msra.mxu0 0.0
    %591 = vmatprep.subr.mxu0 0.0
    %592 = vmatpush2.msra.mxu0 0.0
    %593 = vmatprep.subr.mxu0 0.0
    %594 = vmatpush2.msra.mxu0 0.0
    %595 = vmatprep.subr.mxu0 0.0
    %596 = vmatpush2.msra.mxu0 0.0
    %597 = vmatprep.subr.mxu0 0.0
    %598 = vmatpush2.msra.mxu0 0.0
    %599 = vmatprep.subr.mxu0 0.0
    %600 = vmatpush2.msra.mxu0 0.0
    %601 = vmatprep.subr.mxu0 0.0
    %602 = vmatpush2.msra.mxu0 0.0
    %603 = vmatprep.subr.mxu0 0.0
    %604 = vmatpush2.msra.mxu0 0.0
    %605 = vmatprep.subr.mxu0 0.0
    %606 = vmatpush2.msra.mxu0 0.0
    %607 = vmatprep.subr.mxu0 0.0
    %608 = vmatpush2.msra.mxu0 0.0
    %609 = vmatprep.subr.mxu0 0.0
    %610 = vmatpush2.msra.mxu0 0.0
    %611 = vmatprep.subr.mxu0 0.0
    %612 = vmatpush2.msra.mxu0 0.0
    %613 = vmatprep.mubr.f32.mxu0 0.0
    %614 = vmatmul.mubr.f32.gmra.mxu0 %v547
    %v615 = vpop.f32.mrf.mxu0
    %v616 = vadd.f32 0.0, %v615
    %v617 = vpop.f32.mrf.mxu0
    %618 = vdwg.mxu0
    %v619 = vadd.f32 %v121, %v616
    %v620 = vxor.u32 %v619, 2147483648
    %v621 = vmul.f32 %v620, 1.442695
    %v622 = vpow.pop %v621
    %v623 = vadd.f32 %v622, 1.0
    %v624 = vrcp.pop %v623
    %v625 = vmul.f32 1.0, %v624
    %v626 = vtanh.pop %v619
    %v628 = vrot.slane %v536, 6
    %v630 = vmul.f32 %v625, %v628
    %632 = vrot.lane.b32.xlu0 %v626, 32
    %v633 = vpop.permute.xlu0 %632
    %v635 = vmul.f32 %v625, %v633
    %637 = vrot.lane.b32.xlu0 %v635, 32
    %v638 = vpop.permute.xlu0 %637
    %v640 = vadd.f32 %v630, %v638
    %v641 = vtanh.pop %v640
    %643 = vrot.lane.b32.xlu0 %v641, 32
    %v644 = vpop.permute.xlu0 %643
    %v646 = vmul.f32 %v625, %v644
    %648 = vrot.lane.b32.xlu0 %v646, 64
    %v649 = vpop.permute.xlu0 %648
    %v650 = vsel %vm124, %v649, 0
    %652 = vmatprep.subr.mxu0 0.0
    %653 = vmatpush1.msra.mxu0 0.0
    %654 = vmatprep.subr.mxu0 0.0
    %655 = vmatpush1.msra.mxu0 0.0
    %656 = vmatprep.subr.mxu0 0.0
    %657 = vmatpush1.msra.mxu0 0.0
    %658 = vmatprep.subr.mxu0 0.0
    %659 = vmatpush1.msra.mxu0 0.0
    %660 = vmatprep.subr.mxu0 0.0
    %661 = vmatpush1.msra.mxu0 0.0
    %662 = vmatprep.subr.mxu0 0.0
    %663 = vmatpush1.msra.mxu0 0.0
    %664 = vmatprep.subr.mxu0 0.0
    %665 = vmatpush1.msra.mxu0 0.0
    %666 = vmatprep.subr.mxu0 0.0
    %667 = vmatpush1.msra.mxu0 0.0
    %668 = vmatprep.subr.mxu0 0.0
    %669 = vmatpush1.msra.mxu0 0.0
    %670 = vmatprep.subr.mxu0 0.0
    %671 = vmatpush1.msra.mxu0 0.0
    %672 = vmatprep.subr.mxu0 0.0
    %673 = vmatpush1.msra.mxu0 0.0
    %674 = vmatprep.subr.mxu0 0.0
    %675 = vmatpush1.msra.mxu0 0.0
    %676 = vmatprep.subr.mxu0 0.0
    %677 = vmatpush1.msra.mxu0 %v28
    %678 = vmatprep.subr.mxu0 0.0
    %679 = vmatpush1.msra.mxu0 %v27
    %680 = vmatprep.subr.mxu0 0.0
    %681 = vmatpush1.msra.mxu0 %v26
    %682 = vmatprep.subr.mxu0 0.0
    %683 = vmatpush1.msra.mxu0 %v25
    %684 = vmatprep.subr.mxu0 0.0
    %685 = vmatpush2.msra.mxu0 0.0
    %686 = vmatprep.subr.mxu0 0.0
    %687 = vmatpush2.msra.mxu0 0.0
    %688 = vmatprep.subr.mxu0 0.0
    %689 = vmatpush2.msra.mxu0 0.0
    %690 = vmatprep.subr.mxu0 0.0
    %691 = vmatpush2.msra.mxu0 0.0
    %692 = vmatprep.subr.mxu0 0.0
    %693 = vmatpush2.msra.mxu0 0.0
    %694 = vmatprep.subr.mxu0 0.0
    %695 = vmatpush2.msra.mxu0 0.0
    %696 = vmatprep.subr.mxu0 0.0
    %697 = vmatpush2.msra.mxu0 0.0
    %698 = vmatprep.subr.mxu0 0.0
    %699 = vmatpush2.msra.mxu0 0.0
    %700 = vmatprep.subr.mxu0 0.0
    %701 = vmatpush2.msra.mxu0 0.0
    %702 = vmatprep.subr.mxu0 0.0
    %703 = vmatpush2.msra.mxu0 0.0
    %704 = vmatprep.subr.mxu0 0.0
    %705 = vmatpush2.msra.mxu0 0.0
    %706 = vmatprep.subr.mxu0 0.0
    %707 = vmatpush2.msra.mxu0 0.0
    %708 = vmatprep.subr.mxu0 0.0
    %709 = vmatpush2.msra.mxu0 0.0
    %710 = vmatprep.subr.mxu0 0.0
    %711 = vmatpush2.msra.mxu0 0.0
    %712 = vmatprep.subr.mxu0 0.0
    %713 = vmatpush2.msra.mxu0 0.0
    %714 = vmatprep.subr.mxu0 0.0
    %715 = vmatpush2.msra.mxu0 0.0
    %716 = vmatprep.mubr.f32.mxu0 0.0
    %717 = vmatmul.mubr.f32.gmra.mxu0 %v650
    %v718 = vpop.f32.mrf.mxu0
    %v719 = vadd.f32 0.0, %v718
    %v720 = vpop.f32.mrf.mxu0
    %721 = vdwg.mxu0
    %v723 = vrot.slane %v719, 6
    %v725 = vadd.f32 %v121, %v723
    %v726 = vxor.u32 %v725, 2147483648
    %v727 = vmul.f32 %v726, 1.442695
    %v728 = vpow.pop %v727
    %v729 = vadd.f32 %v728, 1.0
    %v730 = vrcp.pop %v729
    %v731 = vmul.f32 1.0, %v730
    %v732 = vtanh.pop %v725
    %v734 = vrot.slane %v640, 6
    %v736 = vmul.f32 %v731, %v734
    %738 = vrot.lane.b32.xlu0 %v732, 32
    %v739 = vpop.permute.xlu0 %738
    %v741 = vmul.f32 %v731, %v739
    %743 = vrot.lane.b32.xlu0 %v741, 32
    %v744 = vpop.permute.xlu0 %743
    %v746 = vadd.f32 %v736, %v744
    %v747 = vtanh.pop %v746
    %749 = vrot.lane.b32.xlu0 %v747, 32
    %v750 = vpop.permute.xlu0 %749
    %v752 = vmul.f32 %v731, %v750
    %v754 = vrot.slane %v752, 2
    %755 = vrot.lane.b32.xlu0 %v754, 64
    %v756 = vpop.permute.xlu0 %755
    %v757 = vsel %vm124, %v756, 0
    %759 = vmatprep.subr.mxu0 0.0
    %760 = vmatpush1.msra.mxu0 0.0
    %761 = vmatprep.subr.mxu0 0.0
    %762 = vmatpush1.msra.mxu0 0.0
    %763 = vmatprep.subr.mxu0 0.0
    %764 = vmatpush1.msra.mxu0 0.0
    %765 = vmatprep.subr.mxu0 0.0
    %766 = vmatpush1.msra.mxu0 0.0
    %767 = vmatprep.subr.mxu0 0.0
    %768 = vmatpush1.msra.mxu0 0.0
    %769 = vmatprep.subr.mxu0 0.0
    %770 = vmatpush1.msra.mxu0 0.0
    %771 = vmatprep.subr.mxu0 0.0
    %772 = vmatpush1.msra.mxu0 0.0
    %773 = vmatprep.subr.mxu0 0.0
    %774 = vmatpush1.msra.mxu0 0.0
    %775 = vmatprep.subr.mxu0 0.0
    %776 = vmatpush1.msra.mxu0 0.0
    %777 = vmatprep.subr.mxu0 0.0
    %778 = vmatpush1.msra.mxu0 0.0
    %779 = vmatprep.subr.mxu0 0.0
    %780 = vmatpush1.msra.mxu0 0.0
    %781 = vmatprep.subr.mxu0 0.0
    %782 = vmatpush1.msra.mxu0 0.0
    %783 = vmatprep.subr.mxu0 0.0
    %784 = vmatpush1.msra.mxu0 %v28
    %785 = vmatprep.subr.mxu0 0.0
    %786 = vmatpush1.msra.mxu0 %v27
    %787 = vmatprep.subr.mxu0 0.0
    %788 = vmatpush1.msra.mxu0 %v26
    %789 = vmatprep.subr.mxu0 0.0
    %790 = vmatpush1.msra.mxu0 %v25
    %791 = vmatprep.subr.mxu0 0.0
    %792 = vmatpush2.msra.mxu0 0.0
    %793 = vmatprep.subr.mxu0 0.0
    %794 = vmatpush2.msra.mxu0 0.0
    %795 = vmatprep.subr.mxu0 0.0
    %796 = vmatpush2.msra.mxu0 0.0
    %797 = vmatprep.subr.mxu0 0.0
    %798 = vmatpush2.msra.mxu0 0.0
    %799 = vmatprep.subr.mxu0 0.0
    %800 = vmatpush2.msra.mxu0 0.0
    %801 = vmatprep.subr.mxu0 0.0
    %802 = vmatpush2.msra.mxu0 0.0
    %803 = vmatprep.subr.mxu0 0.0
    %804 = vmatpush2.msra.mxu0 0.0
    %805 = vmatprep.subr.mxu0 0.0
    %806 = vmatpush2.msra.mxu0 0.0
    %807 = vmatprep.subr.mxu0 0.0
    %808 = vmatpush2.msra.mxu0 0.0
    %809 = vmatprep.subr.mxu0 0.0
    %810 = vmatpush2.msra.mxu0 0.0
    %811 = vmatprep.subr.mxu0 0.0
    %812 = vmatpush2.msra.mxu0 0.0
    %813 = vmatprep.subr.mxu0 0.0
    %814 = vmatpush2.msra.mxu0 0.0
    %815 = vmatprep.subr.mxu0 0.0
    %816 = vmatpush2.msra.mxu0 0.0
    %817 = vmatprep.subr.mxu0 0.0
    %818 = vmatpush2.msra.mxu0 0.0
    %819 = vmatprep.subr.mxu0 0.0
    %820 = vmatpush2.msra.mxu0 0.0
    %821 = vmatprep.subr.mxu0 0.0
    %822 = vmatpush2.msra.mxu0 0.0
    %823 = vmatprep.mubr.f32.mxu0 0.0
    %824 = vmatmul.mubr.f32.gmra.mxu0 %v757
    %v825 = vpop.f32.mrf.mxu0
    %v826 = vadd.f32 0.0, %v825
    %v827 = vpop.f32.mrf.mxu0
    %828 = vdwg.mxu0
    %v830 = vrot.slane %v826, 4
    %v832 = vadd.f32 %v121, %v830
    %v833 = vxor.u32 %v832, 2147483648
    %v834 = vmul.f32 %v833, 1.442695
    %v835 = vpow.pop %v834
    %v836 = vadd.f32 %v835, 1.0
    %v837 = vrcp.pop %v836
    %v838 = vmul.f32 1.0, %v837
    %v839 = vtanh.pop %v832
    %v841 = vrot.slane %v746, 6
    %v843 = vmul.f32 %v838, %v841
    %845 = vrot.lane.b32.xlu0 %v839, 32
    %v846 = vpop.permute.xlu0 %845
    %v848 = vmul.f32 %v838, %v846
    %850 = vrot.lane.b32.xlu0 %v848, 32
    %v851 = vpop.permute.xlu0 %850
    %v853 = vadd.f32 %v843, %v851
    %v854 = vtanh.pop %v853
    %856 = vrot.lane.b32.xlu0 %v854, 32
    %v857 = vpop.permute.xlu0 %856
    %v859 = vmul.f32 %v838, %v857
    %v861 = vrot.slane %v859, 4
    %862 = vrot.lane.b32.xlu0 %v861, 64
    %v863 = vpop.permute.xlu0 %862
    %v864 = vsel %vm124, %v863, 0
    %866 = vmatprep.subr.mxu0 0.0
    %867 = vmatpush1.msra.mxu0 0.0
    %868 = vmatprep.subr.mxu0 0.0
    %869 = vmatpush1.msra.mxu0 0.0
    %870 = vmatprep.subr.mxu0 0.0
    %871 = vmatpush1.msra.mxu0 0.0
    %872 = vmatprep.subr.mxu0 0.0
    %873 = vmatpush1.msra.mxu0 0.0
    %874 = vmatprep.subr.mxu0 0.0
    %875 = vmatpush1.msra.mxu0 0.0
    %876 = vmatprep.subr.mxu0 0.0
    %877 = vmatpush1.msra.mxu0 0.0
    %878 = vmatprep.subr.mxu0 0.0
    %879 = vmatpush1.msra.mxu0 0.0
    %880 = vmatprep.subr.mxu0 0.0
    %881 = vmatpush1.msra.mxu0 0.0
    %882 = vmatprep.subr.mxu0 0.0
    %883 = vmatpush1.msra.mxu0 0.0
    %884 = vmatprep.subr.mxu0 0.0
    %885 = vmatpush1.msra.mxu0 0.0
    %886 = vmatprep.subr.mxu0 0.0
    %887 = vmatpush1.msra.mxu0 0.0
    %888 = vmatprep.subr.mxu0 0.0
    %889 = vmatpush1.msra.mxu0 0.0
    %890 = vmatprep.subr.mxu0 0.0
    %891 = vmatpush1.msra.mxu0 %v28
    %892 = vmatprep.subr.mxu0 0.0
    %893 = vmatpush1.msra.mxu0 %v27
    %894 = vmatprep.subr.mxu0 0.0
    %895 = vmatpush1.msra.mxu0 %v26
    %896 = vmatprep.subr.mxu0 0.0
    %897 = vmatpush1.msra.mxu0 %v25
    %898 = vmatprep.subr.mxu0 0.0
    %899 = vmatpush2.msra.mxu0 0.0
    %900 = vmatprep.subr.mxu0 0.0
    %901 = vmatpush2.msra.mxu0 0.0
    %902 = vmatprep.subr.mxu0 0.0
    %903 = vmatpush2.msra.mxu0 0.0
    %904 = vmatprep.subr.mxu0 0.0
    %905 = vmatpush2.msra.mxu0 0.0
    %906 = vmatprep.subr.mxu0 0.0
    %907 = vmatpush2.msra.mxu0 0.0
    %908 = vmatprep.subr.mxu0 0.0
    %909 = vmatpush2.msra.mxu0 0.0
    %910 = vmatprep.subr.mxu0 0.0
    %911 = vmatpush2.msra.mxu0 0.0
    %912 = vmatprep.subr.mxu0 0.0
    %913 = vmatpush2.msra.mxu0 0.0
    %914 = vmatprep.subr.mxu0 0.0
    %915 = vmatpush2.msra.mxu0 0.0
    %916 = vmatprep.subr.mxu0 0.0
    %917 = vmatpush2.msra.mxu0 0.0
    %918 = vmatprep.subr.mxu0 0.0
    %919 = vmatpush2.msra.mxu0 0.0
    %920 = vmatprep.subr.mxu0 0.0
    %921 = vmatpush2.msra.mxu0 0.0
    %922 = vmatprep.subr.mxu0 0.0
    %923 = vmatpush2.msra.mxu0 0.0
    %924 = vmatprep.subr.mxu0 0.0
    %925 = vmatpush2.msra.mxu0 0.0
    %926 = vmatprep.subr.mxu0 0.0
    %927 = vmatpush2.msra.mxu0 0.0
    %928 = vmatprep.subr.mxu0 0.0
    %929 = vmatpush2.msra.mxu0 0.0
    %930 = vmatprep.mubr.f32.mxu0 0.0
    %931 = vmatmul.mubr.f32.gmra.mxu0 %v864
    %v932 = vpop.f32.mrf.mxu0
    %v933 = vadd.f32 0.0, %v932
    %v934 = vpop.f32.mrf.mxu0
    %935 = vdwg.mxu0
    %v937 = vrot.slane %v933, 2
    %v939 = vadd.f32 %v121, %v937
    %v940 = vxor.u32 %v939, 2147483648
    %v941 = vmul.f32 %v940, 1.442695
    %v942 = vpow.pop %v941
    %v943 = vadd.f32 %v942, 1.0
    %v944 = vrcp.pop %v943
    %v945 = vmul.f32 1.0, %v944
    %v946 = vtanh.pop %v939
    %v948 = vrot.slane %v853, 6
    %v950 = vmul.f32 %v945, %v948
    %952 = vrot.lane.b32.xlu0 %v946, 32
    %v953 = vpop.permute.xlu0 %952
    %v955 = vmul.f32 %v945, %v953
    %957 = vrot.lane.b32.xlu0 %v955, 32
    %v958 = vpop.permute.xlu0 %957
    %v960 = vadd.f32 %v950, %v958
    %v961 = vtanh.pop %v960
    %963 = vrot.lane.b32.xlu0 %v961, 32
    %v964 = vpop.permute.xlu0 %963
    %v966 = vmul.f32 %v945, %v964
    %v967 = vld [vmem:[%s4] sm:$0xff]
    %v968 = vld [vmem:[%s4 + $0x8] sm:$0xff]
    %v969 = vld [vmem:[%s4 + $0x10] sm:$0xff]
    %v970 = vld [vmem:[%s4 + $0x18] sm:$0xff]
    %v971 = vld [vmem:[%s5] sm:$0x1]
    %v973 = vlaneseq
    %v974 = vshrl.u32 %v973, 7
    %v975 = vsub.s32 0, %v974
    %v976 = vrot.slane %v971, %v975
    %v979 = vrot.slane %v966, 6
    %980 = vrot.lane.b32.xlu0 %v979, 64
    %v981 = vpop.permute.xlu0 %980
    %v982 = vsel %vm124, %v981, 0
    %984 = vmatprep.subr.mxu0 0.0
    %985 = vmatpush1.msra.mxu0 0.0
    %986 = vmatprep.subr.mxu0 0.0
    %987 = vmatpush1.msra.mxu0 0.0
    %988 = vmatprep.subr.mxu0 0.0
    %989 = vmatpush1.msra.mxu0 0.0
    %990 = vmatprep.subr.mxu0 0.0
    %991 = vmatpush1.msra.mxu0 0.0
    %992 = vmatprep.subr.mxu0 0.0
    %993 = vmatpush1.msra.mxu0 0.0
    %994 = vmatprep.subr.mxu0 0.0
    %995 = vmatpush1.msra.mxu0 0.0
    %996 = vmatprep.subr.mxu0 0.0
    %997 = vmatpush1.msra.mxu0 0.0
    %998 = vmatprep.subr.mxu0 0.0
    %999 = vmatpush1.msra.mxu0 0.0
    %1000 = vmatprep.subr.mxu0 0.0
    %1001 = vmatpush1.msra.mxu0 0.0
    %1002 = vmatprep.subr.mxu0 0.0
    %1003 = vmatpush1.msra.mxu0 0.0
    %1004 = vmatprep.subr.mxu0 0.0
    %1005 = vmatpush1.msra.mxu0 0.0
    %1006 = vmatprep.subr.mxu0 0.0
    %1007 = vmatpush1.msra.mxu0 0.0
    %1008 = vmatprep.subr.mxu0 0.0
    %1009 = vmatpush1.msra.mxu0 %v970
    %1010 = vmatprep.subr.mxu0 0.0
    %1011 = vmatpush1.msra.mxu0 %v969
    %1012 = vmatprep.subr.mxu0 0.0
    %1013 = vmatpush1.msra.mxu0 %v968
    %1014 = vmatprep.subr.mxu0 0.0
    %1015 = vmatpush1.msra.mxu0 %v967
    %1016 = vmatprep.subr.mxu0 0.0
    %1017 = vmatpush2.msra.mxu0 0.0
    %1018 = vmatprep.subr.mxu0 0.0
    %1019 = vmatpush2.msra.mxu0 0.0
    %1020 = vmatprep.subr.mxu0 0.0
    %1021 = vmatpush2.msra.mxu0 0.0
    %1022 = vmatprep.subr.mxu0 0.0
    %1023 = vmatpush2.msra.mxu0 0.0
    %1024 = vmatprep.subr.mxu0 0.0
    %1025 = vmatpush2.msra.mxu0 0.0
    %1026 = vmatprep.subr.mxu0 0.0
    %1027 = vmatpush2.msra.mxu0 0.0
    %1028 = vmatprep.subr.mxu0 0.0
    %1029 = vmatpush2.msra.mxu0 0.0
    %1030 = vmatprep.subr.mxu0 0.0
    %1031 = vmatpush2.msra.mxu0 0.0
    %1032 = vmatprep.subr.mxu0 0.0
    %1033 = vmatpush2.msra.mxu0 0.0
    %1034 = vmatprep.subr.mxu0 0.0
    %1035 = vmatpush2.msra.mxu0 0.0
    %1036 = vmatprep.subr.mxu0 0.0
    %1037 = vmatpush2.msra.mxu0 0.0
    %1038 = vmatprep.subr.mxu0 0.0
    %1039 = vmatpush2.msra.mxu0 0.0
    %1040 = vmatprep.subr.mxu0 0.0
    %1041 = vmatpush2.msra.mxu0 0.0
    %1042 = vmatprep.subr.mxu0 0.0
    %1043 = vmatpush2.msra.mxu0 0.0
    %1044 = vmatprep.subr.mxu0 0.0
    %1045 = vmatpush2.msra.mxu0 0.0
    %1046 = vmatprep.subr.mxu0 0.0
    %1047 = vmatpush2.msra.mxu0 0.0
    %1048 = vmatprep.mubr.f32.mxu0 0.0
    %1049 = vmatmul.mubr.f32.gmra.mxu0 %v982
    %v1050 = vpop.f32.mrf.mxu0
    %v1051 = vadd.f32 %v976, %v1050
    %v1052 = vpop.f32.mrf.mxu0
    %1053 = vdwg.mxu0
    %v1054 = vxor.u32 %v1051, 2147483648
    %v1055 = vmul.f32 %v1054, 1.442695
    %v1056 = vpow.pop %v1055
    %v1057 = vadd.f32 %v1056, 1.0
    %v1058 = vrcp.pop %v1057
    %v1059 = vmul.f32 1.0, %v1058
    %vm1060 = vcmask 17408
    %1061 = vst.msk [vmem:[#allocation2] sm:$0x3] %vm1060, %v1059
    // Predicated region
    $region26: #{simple_rnn_classification.1} parent=1 // pred_check
      _
    $region27: #{simple_rnn_classification.1} parent=1 // pred_check_branch
      %1063 = sbr.rel (0) target = $region29
    $region28: #{simple_rnn_classification.1} parent=1 // pred_region
      %s1065 = ssub.s32 32, 32
      %1066 = vsyncadd [#allocation3], %s1065
      %s1068 = sshll.u32 [#allocation2], 4
      %s1069 = int_to_ptr.vmem [resolvable:$true] %s1068
      %1071 = dma.vmem_to_hbm [thread:$0]  %s1069, 32, %s6, [#allocation3]
    $region29: #{simple_rnn_classification.1} parent=1 // pred_fallthru
      _
    // Predicated region
    $region30: #{simple_rnn_classification.1} parent=1 // pred_check
      _
    $region31: #{simple_rnn_classification.1} parent=1 // pred_check_branch
      %1073 = sbr.rel (0) target = $region33
    $region32: #{simple_rnn_classification.1} parent=1 // pred_region
      %1074 = dma.done [#allocation3], 32
    $region33: #{simple_rnn_classification.1} parent=1 // pred_fallthru
      _
    %1075 = vsyncpa [#allocation3], 1

</llo_original>
